<compile_context>
chip_gen: v5e
topology: v5e:2x2
jax: 0.10.0
libtpu: 0.0.40
codegen_flags: <defaults>
</compile_context>

<pallas_src>
import numpy as np
import jax
import jax.numpy as jnp
from jax.experimental import pallas as pl
from jax.experimental.pallas import tpu as pltpu

_EPS = 1e-6          # RMSELoss eps
_C1 = 0.01 ** 2      # kornia SSIM constants (max_val = 1.0)
_C2 = 0.03 ** 2


def _gaussian_kernel1d(window_size: int, sigma: float = 1.5) -> np.ndarray:
    """kornia.filters.get_gaussian_kernel (normalized 1D gaussian)."""
    x = np.arange(window_size, dtype=np.float64) - window_size // 2
    g = np.exp(-(x ** 2) / (2.0 * sigma ** 2))
    return g / g.sum()


def _band_matrix(size: int, kern: np.ndarray) -> np.ndarray:
    """(size, size) banded matrix B such that (img @ B)[o] = sum_j k[j]*img[o+j-pad]
    with zero padding (kornia compute_zero_padding semantics). Symmetric, so it
    also serves the row blur (B @ X)."""
    ws = len(kern)
    pad = ws // 2
    B = np.zeros((size, size), dtype=np.float32)
    for o in range(size):
        for j in range(ws):
            i = o + j - pad
            if 0 <= i < size:
                B[i, o] = kern[j]
    return B


def _rmse_w_ssim_kernel(xy_ref, bw_ref, bhk_ref, out_ref):
    x = xy_ref[0]          # (H, P*W) logits, f32
    y = xy_ref[1]          # (H, P*W) target in [0, 1], f32
    h, l = x.shape
    inv_n = 1.0 / float(h * l)

    # sigmoid(input) — shared by both loss branches (exp -> EUP slot)
    s = 1.0 / (1.0 + jnp.exp(-x))

    # RMSE branch: sqrt(mean((sigmoid(x) - y)^2) + eps)
    d = s - y
    rmse = jnp.sqrt(jnp.sum(d * d) * inv_n + _EPS)

    # Stack the 5 blur inputs into one slab (sublane-aligned: h is a mult. of 8)
    slab = jnp.concatenate([s, y, s * s, y * y, s * y], axis=0)      # (5H, L)

    # W-pass, both windows fused into one 256-wide MXU matmul.
    t = jnp.dot(slab, bw_ref[...], preferred_element_type=jnp.float32)   # (5H, 2L)

    # H-pass: one matmul per window (block-diag kron(I5, bh) covers all 5 inputs).
    b5 = jnp.dot(bhk_ref[0], t[:, :l], preferred_element_type=jnp.float32)   # (5H, L)
    b11 = jnp.dot(bhk_ref[1], t[:, l:], preferred_element_type=jnp.float32)  # (5H, L)

    # Fuse both windows along lanes (128-aligned) so the SSIM elementwise math
    # and the final reduction run once over a (H, 2L) map.
    blur = jnp.concatenate([b5, b11], axis=1)                        # (5H, 2L)

    mu1 = blur[0:h]
    mu2 = blur[h:2 * h]
    e_xx = blur[2 * h:3 * h]
    e_yy = blur[3 * h:4 * h]
    e_xy = blur[4 * h:5 * h]

    mu1_sq = mu1 * mu1
    mu2_sq = mu2 * mu2
    mu12 = mu1 * mu2
    sigma1_sq = e_xx - mu1_sq
    sigma2_sq = e_yy - mu2_sq
    sigma12 = e_xy - mu12

    num = (2.0 * mu12 + _C1) * (2.0 * sigma12 + _C2)
    den = (mu1_sq + mu2_sq + _C1) * (sigma1_sq + sigma2_sq + _C2)

    # EUP approximate reciprocal + one Newton refinement (accuracy ~f32 divide).
    r = pl.reciprocal(den, approx=True)
    r = r * (2.0 - den * r)
    ssim_map = num * r

    # kornia SSIM loss map: clamp((1 - ssim) / 2, 0, 1); single reduction over
    # both windows (sum of the two per-window means).
    loss_map = jnp.clip((1.0 - ssim_map) * 0.5, 0.0, 1.0)
    ssim_total = jnp.sum(loss_map) * inv_n

    # final: sqrt(ssim_loss) + 4 * rmse_loss
    out_ref[0, 0] = jnp.sqrt(ssim_total) + 4.0 * rmse


def rmse_w_ssim_loss(inp, tgt):
    """inp, tgt: NCHW float32 (logits / target in [0, 1]). Returns scalar f32 loss."""
    N, C, H, W = inp.shape
    P = N * C
    L = P * W

    # Single lane-dense input buffer: (2, H, P*W); for 2x4x16x16 last dim = 128.
    xy = jnp.stack([inp, tgt]).astype(jnp.float32)                   # (2,N,C,H,W)
    xy = jnp.transpose(xy, (0, 3, 1, 2, 4)).reshape(2, H, L)         # (2,H,P*W)

    # Blur constants (jit-time numpy constants, no per-call wrapper ops).
    k5 = _gaussian_kernel1d(5)
    k11 = _gaussian_kernel1d(11)
    eye_p = np.eye(P, dtype=np.float32)
    eye_5 = np.eye(5, dtype=np.float32)
    # Fused W-pass matrix: [kron(I_P, bw5) | kron(I_P, bw11)]  -> (L, 2L)
    bw = np.concatenate([np.kron(eye_p, _band_matrix(W, k5)),
                         np.kron(eye_p, _band_matrix(W, k11))], axis=1)
    # Stacked H-pass matrices: kron(I_5, bh) per window -> (2, 5H, 5H)
    bhk = np.stack([np.kron(eye_5, _band_matrix(H, k5)),
                    np.kron(eye_5, _band_matrix(H, k11))])

    # Advisory cost hint (3 matmuls + elementwise; exp/recip/sqrt on EUP).
    flops = 2 * (5 * H) * L * (2 * L) + 2 * 2 * (5 * H) * (5 * H) * L + 40 * H * L
    transcendentals = 3 * H * L + 4
    bytes_accessed = 4 * (2 * H * L + L * 2 * L + 2 * 25 * H * H) + 4

    vmem = pl.BlockSpec(memory_space=pltpu.MemorySpace.VMEM)
    out = pl.pallas_call(
        _rmse_w_ssim_kernel,
        out_shape=jax.ShapeDtypeStruct((1, 1), jnp.float32),
        in_specs=[vmem, vmem, vmem],
        out_specs=pl.BlockSpec(memory_space=pltpu.MemorySpace.SMEM),
        cost_estimate=pl.CostEstimate(flops=int(flops),
                                      transcendentals=int(transcendentals),
                                      bytes_accessed=int(bytes_accessed)),
    )(xy, jnp.asarray(bw), jnp.asarray(bhk))
    return out[0, 0]


if __name__ == "__main__":
    key = jax.random.PRNGKey(0)
    k1, k2 = jax.random.split(key)
    # small NCHW shapes: batch=2, channels=4, 16x16 spatial
    x = jax.random.normal(k1, (2, 4, 16, 16), dtype=jnp.float32)    # raw logits
    t = jax.random.uniform(k2, (2, 4, 16, 16), dtype=jnp.float32)   # target in [0, 1]

    loss = jax.jit(rmse_w_ssim_loss)(x, t)
    jax.block_until_ready(loss)
    assert loss.shape == () and bool(jnp.isfinite(loss))
    print("KERNEL_OK")
</pallas_src>

<mosaic_0001>
module attributes {stable_mosaic.version = 11 : i64} {
  func.func @_rmse_w_ssim_kernel(%arg0: memref<2x16x128xf32, #tpu.memory_space<vmem>>, %arg1: memref<128x256xf32, #tpu.memory_space<vmem>>, %arg2: memref<2x80x80xf32, #tpu.memory_space<vmem>>, %arg3: memref<1x1xf32, #tpu.memory_space<smem>>) attributes {dimension_semantics = [], scalar_prefetch = 0 : i64, scratch_operands = 0 : i64, tpu.core_type = #tpu.core_type<tc>} {
    %c0 = arith.constant 0 : index
    %c0_0 = arith.constant 0 : index
    %c0_1 = arith.constant 0 : index
    %0 = vector.load %arg0[%c0, %c0_0, %c0_1] : memref<2x16x128xf32, #tpu.memory_space<vmem>>, vector<1x16x128xf32>
    %1 = vector.shape_cast %0 : vector<1x16x128xf32> to vector<16x128xf32>
    %c1 = arith.constant 1 : index
    %c0_2 = arith.constant 0 : index
    %c0_3 = arith.constant 0 : index
    %2 = vector.load %arg0[%c1, %c0_2, %c0_3] : memref<2x16x128xf32, #tpu.memory_space<vmem>>, vector<1x16x128xf32>
    %3 = vector.shape_cast %2 : vector<1x16x128xf32> to vector<16x128xf32>
    %cst = arith.constant 0.000000e+00 : f32
    %4 = vector.broadcast %cst : f32 to vector<16x128xf32>
    %5 = arith.subf %4, %1 : vector<16x128xf32>
    %6 = math.exp %5 : vector<16x128xf32>
    %cst_4 = arith.constant 1.000000e+00 : f32
    %7 = vector.broadcast %cst_4 : f32 to vector<16x128xf32>
    %8 = arith.addf %7, %6 : vector<16x128xf32>
    %cst_5 = arith.constant 1.000000e+00 : f32
    %9 = vector.broadcast %cst_5 : f32 to vector<16x128xf32>
    %10 = arith.divf %9, %8 : vector<16x128xf32>
    %11 = arith.subf %10, %3 : vector<16x128xf32>
    %12 = arith.mulf %11, %11 : vector<16x128xf32>
    %13 = vector.shape_cast %12 : vector<16x128xf32> to vector<1x16x128xf32>
    %cst_6 = arith.constant dense<0.000000e+00> : vector<1xf32>
    %14 = vector.multi_reduction <add>, %13, %cst_6 [1, 2] : vector<1x16x128xf32> to vector<1xf32>
    %15 = vector.shape_cast %14 : vector<1xf32> to vector<1x1x1xf32>
    %16 = vector.extract %15[0, 0, 0] : f32 from vector<1x1x1xf32>
    %cst_7 = arith.constant 4.8828125E-4 : f32
    %17 = arith.mulf %16, %cst_7 : f32
    %cst_8 = arith.constant 9.99999997E-7 : f32
    %18 = arith.addf %17, %cst_8 : f32
    %19 = math.sqrt %18 : f32
    %20 = arith.mulf %10, %10 : vector<16x128xf32>
    %21 = arith.mulf %3, %3 : vector<16x128xf32>
    %22 = arith.mulf %10, %3 : vector<16x128xf32>
    %23 = tpu.concatenate %10, %3, %20, %21, %22 in 0 : vector<16x128xf32>, vector<16x128xf32>, vector<16x128xf32>, vector<16x128xf32>, vector<16x128xf32> -> vector<80x128xf32>
    %c0_9 = arith.constant 0 : index
    %c0_10 = arith.constant 0 : index
    %24 = vector.load %arg1[%c0_9, %c0_10] : memref<128x256xf32, #tpu.memory_space<vmem>>, vector<128x256xf32>
    %cst_11 = arith.constant dense<0.000000e+00> : vector<80x256xf32>
    %25 = tpu.matmul %23, %24, %cst_11 {dimension_numbers = #tpu.dot_dimension_numbers<[1], [0], [0], [1], [0, 0, 1, 1], [], []>} : vector<80x128xf32>, vector<128x256xf32>, vector<80x256xf32> -> vector<80x256xf32>
    %c0_12 = arith.constant 0 : index
    %c0_13 = arith.constant 0 : index
    %c0_14 = arith.constant 0 : index
    %26 = vector.load %arg2[%c0_12, %c0_13, %c0_14] : memref<2x80x80xf32, #tpu.memory_space<vmem>>, vector<1x80x80xf32>
    %27 = vector.shape_cast %26 : vector<1x80x80xf32> to vector<80x80xf32>
    %28 = vector.extract_strided_slice %25 {offsets = [0, 0], sizes = [80, 128], strides = [1, 1]} : vector<80x256xf32> to vector<80x128xf32>
    %cst_15 = arith.constant dense<0.000000e+00> : vector<80x128xf32>
    %29 = tpu.matmul %27, %28, %cst_15 {dimension_numbers = #tpu.dot_dimension_numbers<[1], [0], [0], [1], [0, 0, 1, 1], [], []>} : vector<80x80xf32>, vector<80x128xf32>, vector<80x128xf32> -> vector<80x128xf32>
    %c1_16 = arith.constant 1 : index
    %c0_17 = arith.constant 0 : index
    %c0_18 = arith.constant 0 : index
    %30 = vector.load %arg2[%c1_16, %c0_17, %c0_18] : memref<2x80x80xf32, #tpu.memory_space<vmem>>, vector<1x80x80xf32>
    %31 = vector.shape_cast %30 : vector<1x80x80xf32> to vector<80x80xf32>
    %32 = vector.extract_strided_slice %25 {offsets = [0, 128], sizes = [80, 128], strides = [1, 1]} : vector<80x256xf32> to vector<80x128xf32>
    %cst_19 = arith.constant dense<0.000000e+00> : vector<80x128xf32>
    %33 = tpu.matmul %31, %32, %cst_19 {dimension_numbers = #tpu.dot_dimension_numbers<[1], [0], [0], [1], [0, 0, 1, 1], [], []>} : vector<80x80xf32>, vector<80x128xf32>, vector<80x128xf32> -> vector<80x128xf32>
    %34 = tpu.concatenate %29, %33 in 1 : vector<80x128xf32>, vector<80x128xf32> -> vector<80x256xf32>
    %35 = vector.extract_strided_slice %34 {offsets = [0, 0], sizes = [16, 256], strides = [1, 1]} : vector<80x256xf32> to vector<16x256xf32>
    %36 = vector.extract_strided_slice %34 {offsets = [16, 0], sizes = [16, 256], strides = [1, 1]} : vector<80x256xf32> to vector<16x256xf32>
    %37 = vector.extract_strided_slice %34 {offsets = [32, 0], sizes = [16, 256], strides = [1, 1]} : vector<80x256xf32> to vector<16x256xf32>
    %38 = vector.extract_strided_slice %34 {offsets = [48, 0], sizes = [16, 256], strides = [1, 1]} : vector<80x256xf32> to vector<16x256xf32>
    %39 = vector.extract_strided_slice %34 {offsets = [64, 0], sizes = [16, 256], strides = [1, 1]} : vector<80x256xf32> to vector<16x256xf32>
    %40 = arith.mulf %35, %35 : vector<16x256xf32>
    %41 = arith.mulf %36, %36 : vector<16x256xf32>
    %42 = arith.mulf %35, %36 : vector<16x256xf32>
    %43 = arith.subf %37, %40 : vector<16x256xf32>
    %44 = arith.subf %38, %41 : vector<16x256xf32>
    %45 = arith.subf %39, %42 : vector<16x256xf32>
    %cst_20 = arith.constant 2.000000e+00 : f32
    %46 = vector.broadcast %cst_20 : f32 to vector<16x256xf32>
    %47 = arith.mulf %46, %42 : vector<16x256xf32>
    %cst_21 = arith.constant 9.99999974E-5 : f32
    %48 = vector.broadcast %cst_21 : f32 to vector<16x256xf32>
    %49 = arith.addf %47, %48 : vector<16x256xf32>
    %cst_22 = arith.constant 2.000000e+00 : f32
    %50 = vector.broadcast %cst_22 : f32 to vector<16x256xf32>
    %51 = arith.mulf %50, %45 : vector<16x256xf32>
    %cst_23 = arith.constant 8.99999984E-4 : f32
    %52 = vector.broadcast %cst_23 : f32 to vector<16x256xf32>
    %53 = arith.addf %51, %52 : vector<16x256xf32>
    %54 = arith.mulf %49, %53 : vector<16x256xf32>
    %55 = arith.addf %40, %41 : vector<16x256xf32>
    %cst_24 = arith.constant 9.99999974E-5 : f32
    %56 = vector.broadcast %cst_24 : f32 to vector<16x256xf32>
    %57 = arith.addf %55, %56 : vector<16x256xf32>
    %58 = arith.addf %43, %44 : vector<16x256xf32>
    %cst_25 = arith.constant 8.99999984E-4 : f32
    %59 = vector.broadcast %cst_25 : f32 to vector<16x256xf32>
    %60 = arith.addf %58, %59 : vector<16x256xf32>
    %61 = arith.mulf %57, %60 : vector<16x256xf32>
    %62 = tpu.reciprocal %61 {approx = true} : vector<16x256xf32> -> vector<16x256xf32>
    %63 = arith.mulf %61, %62 : vector<16x256xf32>
    %cst_26 = arith.constant 2.000000e+00 : f32
    %64 = vector.broadcast %cst_26 : f32 to vector<16x256xf32>
    %65 = arith.subf %64, %63 : vector<16x256xf32>
    %66 = arith.mulf %62, %65 : vector<16x256xf32>
    %67 = arith.mulf %54, %66 : vector<16x256xf32>
    %cst_27 = arith.constant 1.000000e+00 : f32
    %68 = vector.broadcast %cst_27 : f32 to vector<16x256xf32>
    %69 = arith.subf %68, %67 : vector<16x256xf32>
    %cst_28 = arith.constant 5.000000e-01 : f32
    %70 = vector.broadcast %cst_28 : f32 to vector<16x256xf32>
    %71 = arith.mulf %69, %70 : vector<16x256xf32>
    %cst_29 = arith.constant 0.000000e+00 : f32
    %cst_30 = arith.constant 1.000000e+00 : f32
    %72 = vector.broadcast %cst_29 : f32 to vector<16x256xf32>
    %73 = arith.maximumf %72, %71 : vector<16x256xf32>
    %74 = vector.broadcast %cst_30 : f32 to vector<16x256xf32>
    %75 = arith.minimumf %74, %73 : vector<16x256xf32>
    %76 = vector.shape_cast %75 : vector<16x256xf32> to vector<1x16x256xf32>
    %cst_31 = arith.constant dense<0.000000e+00> : vector<1xf32>
    %77 = vector.multi_reduction <add>, %76, %cst_31 [1, 2] : vector<1x16x256xf32> to vector<1xf32>
    %78 = vector.shape_cast %77 : vector<1xf32> to vector<1x1x1xf32>
    %79 = vector.extract %78[0, 0, 0] : f32 from vector<1x1x1xf32>
    %cst_32 = arith.constant 4.8828125E-4 : f32
    %80 = arith.mulf %79, %cst_32 : f32
    %81 = math.sqrt %80 : f32
    %cst_33 = arith.constant 4.000000e+00 : f32
    %82 = arith.mulf %cst_33, %19 : f32
    %83 = arith.addf %81, %82 : f32
    %c0_34 = arith.constant 0 : index
    %c0_35 = arith.constant 0 : index
    %84 = memref.load %arg3[%c0_34, %c0_35] : memref<1x1xf32, #tpu.memory_space<smem>>
    memref.store %83, %arg3[%c0_34, %c0_35] : memref<1x1xf32, #tpu.memory_space<smem>>
    return
  }
}

</mosaic_0001>

<llo_original>
// kernel: rmse_w_ssim_loss.1
$region0: #{rmse_w_ssim_loss.1}
  #allocation0 [shape = 'u32[]', space=smem, size = 0x4, offset = 0x4, fixed_abs, tag = 'smem constant byte address 0x4 - core index']
  #allocation1 [shape = 'u32[72,128]{1,0:T(1,128)}', space=vmem, size = 0x9000, scoped, tag = 'internal scratch']
  %s0 = inlined_call_operand.vmem [shape: f32[2,16,128], index: 0, kind: input, shape index: {}]
  %s1 = inlined_call_operand.vmem [shape: f32[128,256], index: 1, kind: input, shape index: {}]
  %s2 = inlined_call_operand.vmem [shape: f32[2,80,80], index: 2, kind: input, shape index: {}]
  %s3 = inlined_call_operand.hbm [shape: f32[1,1], index: 3, kind: output, shape index: {}]
  %s4 = sld [smem:[#allocation0]]
  $region22: #{rmse_w_ssim_loss.1} parent=0
    _
  %s6 = ssub.s32 1, %s4
  %s7 = scalar_select 0, %s6, %s4
  $region1: #{rmse_w_ssim_loss.1} parent=0
    #allocation2 [shape = 'u8[512]{0}', space=smem, size = 0x200, scoped, tag = 'output window, operand 0, single buffered']
    #allocation3 [shape = 's32[1]{0}', space=sflag, size = 0x4, scoped, tag = 'scoped memory for rmse_w_ssim_loss.1']
    %8 = vsyncpa [#allocation3], 0
    // Predicated region
    $region2: #{rmse_w_ssim_loss.1} parent=1 // pred_check
      _
    $region3: #{rmse_w_ssim_loss.1} parent=1 // pred_check_branch
      %10 = sbr.rel (0) target = $region5
    $region4: #{rmse_w_ssim_loss.1} parent=1 // pred_region
      _
    $region5: #{rmse_w_ssim_loss.1} parent=1 // pred_fallthru
      _
    // Predicated region
    $region6: #{rmse_w_ssim_loss.1} parent=1 // pred_check
      _
    $region7: #{rmse_w_ssim_loss.1} parent=1 // pred_check_branch
      %12 = sbr.rel (0) target = $region9
    $region8: #{rmse_w_ssim_loss.1} parent=1 // pred_region
      _
    $region9: #{rmse_w_ssim_loss.1} parent=1 // pred_fallthru
      _
    // Predicated region
    $region10: #{rmse_w_ssim_loss.1} parent=1 // pred_check
      _
    $region11: #{rmse_w_ssim_loss.1} parent=1 // pred_check_branch
      %14 = sbr.rel (0) target = $region13
    $region12: #{rmse_w_ssim_loss.1} parent=1 // pred_region
      _
    $region13: #{rmse_w_ssim_loss.1} parent=1 // pred_fallthru
      _
    %v15 = vld [vmem:[%s0] sm:$0xff]
    %v16 = vld [vmem:[%s0 + $0x8] sm:$0xff]
    %s17 = scalar_lea.vmem %s0, 16
    %v18 = vld [vmem:[%s17] sm:$0xff]
    %v19 = vld [vmem:[%s17 + $0x8] sm:$0xff]
    %v20 = vsub.f32 0.0, %v15
    %v21 = vsub.f32 0.0, %v16
    %v22 = vmul.f32 %v20, 1.442695
    %v23 = vpow.pop %v22
    %v24 = vmul.f32 %v21, 1.442695
    %v25 = vpow.pop %v24
    %v26 = vadd.f32 %v23, 1.0
    %v27 = vadd.f32 %v25, 1.0
    %v28 = vrcp.pop %v26
    %v29 = vmul.f32 %v26, %v28
    %v30 = vsub.f32 1.0, %v29
    %v31 = vmul.f32 %v28, %v30
    %v32 = vadd.f32 %v28, %v31
    %vm33 = vweird.f32 %v26
    %vm34 = vweird.f32 %v28
    %vm35 = vmor %vm33, %vm34
    %v36 = vsel %vm35, %v28, %v32
    %v37 = vand.u32 2147483647, %v26
    %vm38 = vcmp.eq.f32.partialorder %v37, 8.507059e+37
    %v39 = vand.u32 %v26, 2147483648
    %v40 = vor.u32 1.1754944e-38, %v39
    %v41 = vsel %vm38, %v40, %v36
    %v42 = vmul.f32 1.0, %v41
    %v43 = vrcp.pop %v27
    %v44 = vmul.f32 %v27, %v43
    %v45 = vsub.f32 1.0, %v44
    %v46 = vmul.f32 %v43, %v45
    %v47 = vadd.f32 %v43, %v46
    %vm48 = vweird.f32 %v27
    %vm49 = vweird.f32 %v43
    %vm50 = vmor %vm48, %vm49
    %v51 = vsel %vm50, %v43, %v47
    %v52 = vand.u32 2147483647, %v27
    %vm53 = vcmp.eq.f32.partialorder %v52, 8.507059e+37
    %v54 = vand.u32 %v27, 2147483648
    %v55 = vor.u32 1.1754944e-38, %v54
    %v56 = vsel %vm53, %v55, %v51
    %v57 = vmul.f32 1.0, %v56
    %v58 = vsub.f32 %v42, %v18
    %v59 = vsub.f32 %v57, %v19
    %v60 = vmul.f32 %v58, %v58
    %v61 = vmul.f32 %v59, %v59
    %v62 = vadd.f32 %v60, %v61
    %63 = vadd.xlane.f32.xlu0 %v62
    %v64 = vpop.xlane.xlu0 %63
    %v65 = vrot.slane %v64, 4
    %v66 = vadd.f32 %v64, %v65
    %v67 = vrot.slane %v66, 2
    %v68 = vadd.f32 %v66, %v67
    %v69 = vrot.slane %v68, 1
    %v70 = vadd.f32 %v68, %v69
    %s71 = vtos %v70
    %s72 = smul.f32 %s71, 0.00048828125
    %s73 = sadd.f32 %s72, 1e-06
    %v74 = vstv %s73
    %v75 = vrsqrt.pop %v74
    %v76 = vmul.f32 %v75, %v74
    %v77 = vmul.f32 %v76, %v75
    %v78 = vmul.f32 0.5, %v77
    %v79 = vsub.f32 1.5, %v78
    %v80 = vmul.f32 %v75, %v79
    %v81 = vmul.f32 %v74, %v80
    %vm82 = vcmp.eq.f32.partialorder %v74, inf
    %v83 = vsel %vm82, %v74, %v81
    %vm84 = vcmp.eq.f32.partialorder %v74, 0.0
    %v85 = vand.u32 %v74, 2147483648
    %v86 = vsel %vm84, %v85, %v83
    %s87 = vtos %v86
    %v88 = vmul.f32 %v42, %v42
    %v89 = vmul.f32 %v57, %v57
    %v90 = vmul.f32 %v18, %v18
    %v91 = vmul.f32 %v19, %v19
    %v92 = vmul.f32 %v42, %v18
    %v93 = vmul.f32 %v57, %v19
    %v94 = vld [vmem:[%s1] sm:$0xff]
    %v95 = vld [vmem:[%s1 + $0x8] sm:$0xff]
    %v96 = vld [vmem:[%s1 + $0x10] sm:$0xff]
    %v97 = vld [vmem:[%s1 + $0x18] sm:$0xff]
    %v98 = vld [vmem:[%s1 + $0x20] sm:$0xff]
    %v99 = vld [vmem:[%s1 + $0x28] sm:$0xff]
    %v100 = vld [vmem:[%s1 + $0x30] sm:$0xff]
    %v101 = vld [vmem:[%s1 + $0x38] sm:$0xff]
    %v102 = vld [vmem:[%s1 + $0x40] sm:$0xff]
    %v103 = vld [vmem:[%s1 + $0x48] sm:$0xff]
    %v104 = vld [vmem:[%s1 + $0x50] sm:$0xff]
    %v105 = vld [vmem:[%s1 + $0x58] sm:$0xff]
    %v106 = vld [vmem:[%s1 + $0x60] sm:$0xff]
    %v107 = vld [vmem:[%s1 + $0x68] sm:$0xff]
    %v108 = vld [vmem:[%s1 + $0x70] sm:$0xff]
    %v109 = vld [vmem:[%s1 + $0x78] sm:$0xff]
    %v110 = vld [vmem:[%s1 + $0x80] sm:$0xff]
    %v111 = vld [vmem:[%s1 + $0x88] sm:$0xff]
    %v112 = vld [vmem:[%s1 + $0x90] sm:$0xff]
    %v113 = vld [vmem:[%s1 + $0x98] sm:$0xff]
    %v114 = vld [vmem:[%s1 + $0xa0] sm:$0xff]
    %v115 = vld [vmem:[%s1 + $0xa8] sm:$0xff]
    %v116 = vld [vmem:[%s1 + $0xb0] sm:$0xff]
    %v117 = vld [vmem:[%s1 + $0xb8] sm:$0xff]
    %v118 = vld [vmem:[%s1 + $0xc0] sm:$0xff]
    %v119 = vld [vmem:[%s1 + $0xc8] sm:$0xff]
    %v120 = vld [vmem:[%s1 + $0xd0] sm:$0xff]
    %v121 = vld [vmem:[%s1 + $0xd8] sm:$0xff]
    %v122 = vld [vmem:[%s1 + $0xe0] sm:$0xff]
    %v123 = vld [vmem:[%s1 + $0xe8] sm:$0xff]
    %v124 = vld [vmem:[%s1 + $0xf0] sm:$0xff]
    %v125 = vld [vmem:[%s1 + $0xf8] sm:$0xff]
    %126 = vmatpush.msra.mxu0 %v124
    %127 = vmatpush.msra.mxu0 %v122
    %128 = vmatpush.msra.mxu0 %v120
    %129 = vmatpush.msra.mxu0 %v118
    %130 = vmatpush.msra.mxu0 %v116
    %131 = vmatpush.msra.mxu0 %v114
    %132 = vmatpush.msra.mxu0 %v112
    %133 = vmatpush.msra.mxu0 %v110
    %134 = vmatpush.msra.mxu0 %v108
    %135 = vmatpush.msra.mxu0 %v106
    %136 = vmatpush.msra.mxu0 %v104
    %137 = vmatpush.msra.mxu0 %v102
    %138 = vmatpush.msra.mxu0 %v100
    %139 = vmatpush.msra.mxu0 %v98
    %140 = vmatpush.msra.mxu0 %v96
    %141 = vmatpush.msra.mxu0 %v94
    %142 = vmatmul.f32.gmra.mxu0 %v42
    %v143 = vpop.f32.mrf.mxu0
    %v144 = vadd.f32 0.0, %v143
    %145 = vmatmul.f32.gmra.mxu0 %v57
    %v146 = vpop.f32.mrf.mxu0
    %v147 = vadd.f32 0.0, %v146
    %148 = vmatmul.f32.gmra.mxu0 %v18
    %v149 = vpop.f32.mrf.mxu0
    %v150 = vadd.f32 0.0, %v149
    %151 = vmatmul.f32.gmra.mxu0 %v19
    %v152 = vpop.f32.mrf.mxu0
    %v153 = vadd.f32 0.0, %v152
    %154 = vmatmul.f32.gmra.mxu0 %v88
    %v155 = vpop.f32.mrf.mxu0
    %v156 = vadd.f32 0.0, %v155
    %157 = vmatmul.f32.gmra.mxu0 %v89
    %v158 = vpop.f32.mrf.mxu0
    %v159 = vadd.f32 0.0, %v158
    %160 = vmatmul.f32.gmra.mxu0 %v90
    %v161 = vpop.f32.mrf.mxu0
    %v162 = vadd.f32 0.0, %v161
    %163 = vmatmul.f32.gmra.mxu0 %v91
    %v164 = vpop.f32.mrf.mxu0
    %v165 = vadd.f32 0.0, %v164
    %166 = vmatmul.f32.gmra.mxu0 %v92
    %v167 = vpop.f32.mrf.mxu0
    %v168 = vadd.f32 0.0, %v167
    %169 = vmatmul.f32.gmra.mxu0 %v93
    %v170 = vpop.f32.mrf.mxu0
    %v171 = vadd.f32 0.0, %v170
    %172 = vdwg.mxu0
    %173 = vmatpush.msra.mxu0 %v125
    %174 = vmatpush.msra.mxu0 %v123
    %175 = vmatpush.msra.mxu0 %v121
    %176 = vmatpush.msra.mxu0 %v119
    %177 = vmatpush.msra.mxu0 %v117
    %178 = vmatpush.msra.mxu0 %v115
    %179 = vmatpush.msra.mxu0 %v113
    %180 = vmatpush.msra.mxu0 %v111
    %181 = vmatpush.msra.mxu0 %v109
    %182 = vmatpush.msra.mxu0 %v107
    %183 = vmatpush.msra.mxu0 %v105
    %184 = vmatpush.msra.mxu0 %v103
    %185 = vmatpush.msra.mxu0 %v101
    %186 = vmatpush.msra.mxu0 %v99
    %187 = vmatpush.msra.mxu0 %v97
    %188 = vmatpush.msra.mxu0 %v95
    %189 = vmatmul.f32.gmra.mxu0 %v42
    %v190 = vpop.f32.mrf.mxu0
    %v191 = vadd.f32 0.0, %v190
    %192 = vmatmul.f32.gmra.mxu0 %v57
    %v193 = vpop.f32.mrf.mxu0
    %v194 = vadd.f32 0.0, %v193
    %195 = vmatmul.f32.gmra.mxu0 %v18
    %v196 = vpop.f32.mrf.mxu0
    %v197 = vadd.f32 0.0, %v196
    %198 = vmatmul.f32.gmra.mxu0 %v19
    %v199 = vpop.f32.mrf.mxu0
    %v200 = vadd.f32 0.0, %v199
    %201 = vmatmul.f32.gmra.mxu0 %v88
    %v202 = vpop.f32.mrf.mxu0
    %v203 = vadd.f32 0.0, %v202
    %204 = vmatmul.f32.gmra.mxu0 %v89
    %v205 = vpop.f32.mrf.mxu0
    %v206 = vadd.f32 0.0, %v205
    %207 = vmatmul.f32.gmra.mxu0 %v90
    %v208 = vpop.f32.mrf.mxu0
    %v209 = vadd.f32 0.0, %v208
    %210 = vmatmul.f32.gmra.mxu0 %v91
    %v211 = vpop.f32.mrf.mxu0
    %v212 = vadd.f32 0.0, %v211
    %213 = vmatmul.f32.gmra.mxu0 %v92
    %v214 = vpop.f32.mrf.mxu0
    %v215 = vadd.f32 0.0, %v214
    %216 = vmatmul.f32.gmra.mxu0 %v93
    %v217 = vpop.f32.mrf.mxu0
    %v218 = vadd.f32 0.0, %v217
    %219 = vdwg.mxu0
    %v220 = vld [vmem:[%s2] sm:$0xff]
    %v221 = vld [vmem:[%s2 + $0x8] sm:$0xff]
    %v222 = vld [vmem:[%s2 + $0x10] sm:$0xff]
    %v223 = vld [vmem:[%s2 + $0x18] sm:$0xff]
    %v224 = vld [vmem:[%s2 + $0x20] sm:$0xff]
    %v225 = vld [vmem:[%s2 + $0x28] sm:$0xff]
    %v226 = vld [vmem:[%s2 + $0x30] sm:$0xff]
    %v227 = vld [vmem:[%s2 + $0x38] sm:$0xff]
    %v228 = vld [vmem:[%s2 + $0x40] sm:$0xff]
    %v229 = vld [vmem:[%s2 + $0x48] sm:$0xff]
    %vm230 = vcmask 654336
    %v232 = vsel %vm230, %v220, 0
    %v235 = vsel %vm230, %v221, 0
    %v238 = vsel %vm230, %v222, 0
    %v241 = vsel %vm230, %v223, 0
    %v244 = vsel %vm230, %v224, 0
    %v247 = vsel %vm230, %v225, 0
    %v250 = vsel %vm230, %v226, 0
    %v253 = vsel %vm230, %v227, 0
    %v256 = vsel %vm230, %v228, 0
    %v259 = vsel %vm230, %v229, 0
    %261 = vmatpush.msra.mxu0 0.0
    %262 = vmatpush.msra.mxu0 0.0
    %263 = vmatpush.msra.mxu0 0.0
    %264 = vmatpush.msra.mxu0 0.0
    %265 = vmatpush.msra.mxu0 0.0
    %266 = vmatpush.msra.mxu0 0.0
    %267 = vmatpush.msra.mxu0 %v171
    %268 = vmatpush.msra.mxu0 %v168
    %269 = vmatpush.msra.mxu0 %v165
    %270 = vmatpush.msra.mxu0 %v162
    %271 = vmatpush.msra.mxu0 %v159
    %272 = vmatpush.msra.mxu0 %v156
    %273 = vmatpush.msra.mxu0 %v153
    %274 = vmatpush.msra.mxu0 %v150
    %275 = vmatpush.msra.mxu0 %v147
    %276 = vmatpush.msra.mxu0 %v144
    %277 = vmatmul.f32.gmra.mxu0 %v232
    %v278 = vpop.f32.mrf.mxu0
    %v279 = vadd.f32 0.0, %v278
    %280 = vmatmul.f32.gmra.mxu0 %v235
    %v281 = vpop.f32.mrf.mxu0
    %v282 = vadd.f32 0.0, %v281
    %283 = vmatmul.f32.gmra.mxu0 %v238
    %v284 = vpop.f32.mrf.mxu0
    %v285 = vadd.f32 0.0, %v284
    %286 = vmatmul.f32.gmra.mxu0 %v241
    %v287 = vpop.f32.mrf.mxu0
    %v288 = vadd.f32 0.0, %v287
    %289 = vmatmul.f32.gmra.mxu0 %v244
    %v290 = vpop.f32.mrf.mxu0
    %v291 = vadd.f32 0.0, %v290
    %292 = vmatmul.f32.gmra.mxu0 %v247
    %v293 = vpop.f32.mrf.mxu0
    %v294 = vadd.f32 0.0, %v293
    %295 = vmatmul.f32.gmra.mxu0 %v250
    %v296 = vpop.f32.mrf.mxu0
    %v297 = vadd.f32 0.0, %v296
    %298 = vmatmul.f32.gmra.mxu0 %v253
    %v299 = vpop.f32.mrf.mxu0
    %v300 = vadd.f32 0.0, %v299
    %301 = vmatmul.f32.gmra.mxu0 %v256
    %v302 = vpop.f32.mrf.mxu0
    %v303 = vadd.f32 0.0, %v302
    %304 = vmatmul.f32.gmra.mxu0 %v259
    %v305 = vpop.f32.mrf.mxu0
    %v306 = vadd.f32 0.0, %v305
    %307 = vdwg.mxu0
    %s308 = scalar_lea.vmem %s2, 80
    %v309 = vld [vmem:[%s308] sm:$0xff]
    %v310 = vld [vmem:[%s308 + $0x8] sm:$0xff]
    %v311 = vld [vmem:[%s308 + $0x10] sm:$0xff]
    %v312 = vld [vmem:[%s308 + $0x18] sm:$0xff]
    %v313 = vld [vmem:[%s308 + $0x20] sm:$0xff]
    %v314 = vld [vmem:[%s308 + $0x28] sm:$0xff]
    %v315 = vld [vmem:[%s308 + $0x30] sm:$0xff]
    %v316 = vld [vmem:[%s308 + $0x38] sm:$0xff]
    %v317 = vld [vmem:[%s308 + $0x40] sm:$0xff]
    %v318 = vld [vmem:[%s308 + $0x48] sm:$0xff]
    %v320 = vsel %vm230, %v309, 0
    %v323 = vsel %vm230, %v310, 0
    %v326 = vsel %vm230, %v311, 0
    %v329 = vsel %vm230, %v312, 0
    %v332 = vsel %vm230, %v313, 0
    %v335 = vsel %vm230, %v314, 0
    %v338 = vsel %vm230, %v315, 0
    %v341 = vsel %vm230, %v316, 0
    %v344 = vsel %vm230, %v317, 0
    %v347 = vsel %vm230, %v318, 0
    %349 = vmatpush.msra.mxu0 0.0
    %350 = vmatpush.msra.mxu0 0.0
    %351 = vmatpush.msra.mxu0 0.0
    %352 = vmatpush.msra.mxu0 0.0
    %353 = vmatpush.msra.mxu0 0.0
    %354 = vmatpush.msra.mxu0 0.0
    %355 = vmatpush.msra.mxu0 %v218
    %356 = vmatpush.msra.mxu0 %v215
    %357 = vmatpush.msra.mxu0 %v212
    %358 = vmatpush.msra.mxu0 %v209
    %359 = vmatpush.msra.mxu0 %v206
    %360 = vmatpush.msra.mxu0 %v203
    %361 = vmatpush.msra.mxu0 %v200
    %362 = vmatpush.msra.mxu0 %v197
    %363 = vmatpush.msra.mxu0 %v194
    %364 = vmatpush.msra.mxu0 %v191
    %365 = vmatmul.f32.gmra.mxu0 %v320
    %v366 = vpop.f32.mrf.mxu0
    %v367 = vadd.f32 0.0, %v366
    %368 = vmatmul.f32.gmra.mxu0 %v323
    %v369 = vpop.f32.mrf.mxu0
    %v370 = vadd.f32 0.0, %v369
    %371 = vmatmul.f32.gmra.mxu0 %v326
    %v372 = vpop.f32.mrf.mxu0
    %v373 = vadd.f32 0.0, %v372
    %374 = vmatmul.f32.gmra.mxu0 %v329
    %v375 = vpop.f32.mrf.mxu0
    %v376 = vadd.f32 0.0, %v375
    %377 = vmatmul.f32.gmra.mxu0 %v332
    %v378 = vpop.f32.mrf.mxu0
    %v379 = vadd.f32 0.0, %v378
    %380 = vmatmul.f32.gmra.mxu0 %v335
    %v381 = vpop.f32.mrf.mxu0
    %v382 = vadd.f32 0.0, %v381
    %383 = vmatmul.f32.gmra.mxu0 %v338
    %v384 = vpop.f32.mrf.mxu0
    %v385 = vadd.f32 0.0, %v384
    %386 = vmatmul.f32.gmra.mxu0 %v341
    %v387 = vpop.f32.mrf.mxu0
    %v388 = vadd.f32 0.0, %v387
    %389 = vmatmul.f32.gmra.mxu0 %v344
    %v390 = vpop.f32.mrf.mxu0
    %v391 = vadd.f32 0.0, %v390
    %392 = vmatmul.f32.gmra.mxu0 %v347
    %v393 = vpop.f32.mrf.mxu0
    %v394 = vadd.f32 0.0, %v393
    %395 = vdwg.mxu0
    %v396 = vmul.f32 %v279, %v279
    %v397 = vmul.f32 %v367, %v367
    %v398 = vmul.f32 %v282, %v282
    %v399 = vmul.f32 %v370, %v370
    %v400 = vmul.f32 %v285, %v285
    %v401 = vmul.f32 %v373, %v373
    %v402 = vmul.f32 %v288, %v288
    %v403 = vmul.f32 %v376, %v376
    %v404 = vmul.f32 %v279, %v285
    %v405 = vmul.f32 %v367, %v373
    %v406 = vmul.f32 %v282, %v288
    %v407 = vmul.f32 %v370, %v376
    %v408 = vsub.f32 %v291, %v396
    %v409 = vsub.f32 %v379, %v397
    %v410 = vsub.f32 %v294, %v398
    %v411 = vsub.f32 %v382, %v399
    %v412 = vsub.f32 %v297, %v400
    %v413 = vsub.f32 %v385, %v401
    %v414 = vsub.f32 %v300, %v402
    %v415 = vsub.f32 %v388, %v403
    %v416 = vsub.f32 %v303, %v404
    %v417 = vsub.f32 %v391, %v405
    %v418 = vsub.f32 %v306, %v406
    %v419 = vsub.f32 %v394, %v407
    %v420 = vmul.f32 %v404, 2.0
    %v421 = vmul.f32 %v405, 2.0
    %v422 = vmul.f32 %v406, 2.0
    %v423 = vmul.f32 %v407, 2.0
    %v424 = vadd.f32 %v420, 0.0001
    %v425 = vadd.f32 %v421, 0.0001
    %v426 = vadd.f32 %v422, 0.0001
    %v427 = vadd.f32 %v423, 0.0001
    %v428 = vmul.f32 %v416, 2.0
    %v429 = vmul.f32 %v417, 2.0
    %v430 = vmul.f32 %v418, 2.0
    %v431 = vmul.f32 %v419, 2.0
    %v432 = vadd.f32 %v428, 0.0009
    %v433 = vadd.f32 %v429, 0.0009
    %v434 = vadd.f32 %v430, 0.0009
    %v435 = vadd.f32 %v431, 0.0009
    %v436 = vmul.f32 %v424, %v432
    %v437 = vmul.f32 %v425, %v433
    %v438 = vmul.f32 %v426, %v434
    %v439 = vmul.f32 %v427, %v435
    %v440 = vadd.f32 %v396, %v400
    %v441 = vadd.f32 %v397, %v401
    %v442 = vadd.f32 %v398, %v402
    %v443 = vadd.f32 %v399, %v403
    %v444 = vadd.f32 %v440, 0.0001
    %v445 = vadd.f32 %v441, 0.0001
    %v446 = vadd.f32 %v442, 0.0001
    %v447 = vadd.f32 %v443, 0.0001
    %v448 = vadd.f32 %v408, %v412
    %v449 = vadd.f32 %v409, %v413
    %v450 = vadd.f32 %v410, %v414
    %v451 = vadd.f32 %v411, %v415
    %v452 = vadd.f32 %v448, 0.0009
    %v453 = vadd.f32 %v449, 0.0009
    %v454 = vadd.f32 %v450, 0.0009
    %v455 = vadd.f32 %v451, 0.0009
    %v456 = vmul.f32 %v444, %v452
    %v457 = vmul.f32 %v445, %v453
    %v458 = vmul.f32 %v446, %v454
    %v459 = vmul.f32 %v447, %v455
    %v460 = vrcp.pop %v456
    %v461 = vrcp.pop %v457
    %v462 = vrcp.pop %v458
    %v463 = vrcp.pop %v459
    %v464 = vmul.f32 %v456, %v460
    %v465 = vmul.f32 %v457, %v461
    %v466 = vmul.f32 %v458, %v462
    %v467 = vmul.f32 %v459, %v463
    %v468 = vsub.f32 2.0, %v464
    %v469 = vsub.f32 2.0, %v465
    %v470 = vsub.f32 2.0, %v466
    %v471 = vsub.f32 2.0, %v467
    %v472 = vmul.f32 %v460, %v468
    %v473 = vmul.f32 %v461, %v469
    %v474 = vmul.f32 %v462, %v470
    %v475 = vmul.f32 %v463, %v471
    %v476 = vmul.f32 %v436, %v472
    %v477 = vmul.f32 %v437, %v473
    %v478 = vmul.f32 %v438, %v474
    %v479 = vmul.f32 %v439, %v475
    %v480 = vsub.f32 1.0, %v476
    %v481 = vsub.f32 1.0, %v477
    %v482 = vsub.f32 1.0, %v478
    %v483 = vsub.f32 1.0, %v479
    %v484 = vmul.f32 %v480, 0.5
    %v485 = vmul.f32 %v481, 0.5
    %v486 = vmul.f32 %v482, 0.5
    %v487 = vmul.f32 %v483, 0.5
    %v488 = vmax.f32 %v484, 0.0
    %v489 = vmax.f32 %v485, 0.0
    %v490 = vmax.f32 %v486, 0.0
    %v491 = vmax.f32 %v487, 0.0
    %v492 = vmin.f32 %v488, 1.0
    %v493 = vmin.f32 %v489, 1.0
    %v494 = vmin.f32 %v490, 1.0
    %v495 = vmin.f32 %v491, 1.0
    %v496 = vadd.f32 %v492, %v493
    %v497 = vadd.f32 %v496, %v494
    %v498 = vadd.f32 %v497, %v495
    %499 = vadd.xlane.f32.xlu0 %v498
    %v500 = vpop.xlane.xlu0 %499
    %v501 = vrot.slane %v500, 4
    %v502 = vadd.f32 %v500, %v501
    %v503 = vrot.slane %v502, 2
    %v504 = vadd.f32 %v502, %v503
    %v505 = vrot.slane %v504, 1
    %v506 = vadd.f32 %v504, %v505
    %s507 = vtos %v506
    %s508 = smul.f32 %s507, 0.00048828125
    %v509 = vstv %s508
    %v510 = vrsqrt.pop %v509
    %v511 = vmul.f32 %v510, %v509
    %v512 = vmul.f32 %v511, %v510
    %v513 = vmul.f32 0.5, %v512
    %v514 = vsub.f32 1.5, %v513
    %v515 = vmul.f32 %v510, %v514
    %v516 = vmul.f32 %v509, %v515
    %vm517 = vcmp.eq.f32.partialorder %v509, inf
    %v518 = vsel %vm517, %v509, %v516
    %vm519 = vcmp.eq.f32.partialorder %v509, 0.0
    %v520 = vand.u32 %v509, 2147483648
    %v521 = vsel %vm519, %v520, %v518
    %s522 = vtos %v521
    %s523 = smul.f32 %s87, 4.0
    %s524 = sadd.f32 %s522, %s523
    %s525 = scalar_lea.smem [#allocation2], 0
    %526 = sst [smem:[%s525]] %s524
    // Predicated region
    $region14: #{rmse_w_ssim_loss.1} parent=1 // pred_check
      _
    $region15: #{rmse_w_ssim_loss.1} parent=1 // pred_check_branch
      %528 = sbr.rel (0) target = $region17
    $region16: #{rmse_w_ssim_loss.1} parent=1 // pred_region
      %530 = vsyncadd [#allocation3], 0
      %s532 = sshll.u32 %s3, 4
      %s533 = int_to_ptr.hbm [resolvable:$true] %s532
      %535 = dma.smem_to_hbm [#allocation2], 16, %s533, [#allocation3]
    $region17: #{rmse_w_ssim_loss.1} parent=1 // pred_fallthru
      _
    // Predicated region
    $region18: #{rmse_w_ssim_loss.1} parent=1 // pred_check
      _
    $region19: #{rmse_w_ssim_loss.1} parent=1 // pred_check_branch
      %537 = sbr.rel (0) target = $region21
    $region20: #{rmse_w_ssim_loss.1} parent=1 // pred_region
      %539 = dma.done [#allocation3], 16
    $region21: #{rmse_w_ssim_loss.1} parent=1 // pred_fallthru
      _
    %540 = sfence
    %541 = vsyncpa [#allocation3], 1

</llo_original>
